<compile_context>
chip_gen: v5e
topology: v5e:2x2
jax: 0.10.0
libtpu: 0.0.40
codegen_flags: <defaults>
</compile_context>

<pallas_src>
import functools

import jax
import jax.numpy as jnp
from jax.experimental import pallas as pl
from jax.experimental.pallas import tpu as pltpu


def mini_conv_block_kernel(x_ref, w_ref, b_ref, gamma_ref, beta_ref, o_ref, *,
                           N, Cin, Cout, H, W, eps, batch_norm):
    """Fused Conv2d(3x3, pad=1) + bias + ReLU + BatchNorm2d (batch statistics).

    x_ref:     (N*Cin,  H*W)        NCHW input flattened (free reshape)
    w_ref:     (N*Cout, 9*N*Cin)    block-diag-over-batch, taps on the K axis
    b_ref:     (N*Cout, 1)          conv bias, pre-tiled per (n, cout) row
    gamma_ref: (N*Cout, 1)          BN weight, pre-tiled
    beta_ref:  (N*Cout, 1)          BN bias, pre-tiled
    o_ref:     (N*Cout, H*W)        NCHW output flattened (lane-dense store)
    """
    HW = H * W
    NCin = N * Cin
    P = W + 1                       # max |flat shift| for a 3x3 'same' conv

    x = x_ref[...]                                           # (N*Cin, HW) f32

    # Flat zero-padded copy so every tap shift is a static lane slice; vertical
    # out-of-bounds taps land in this zero pad automatically.
    zpad = jnp.zeros((NCin, P), jnp.float32)
    xf = jnp.concatenate([zpad, x, zpad], axis=1)            # (N*Cin, HW + 2W + 2)

    # Hoisted column masks: only horizontal out-of-bounds needs explicit masking.
    col = jax.lax.broadcasted_iota(jnp.int32, (NCin, HW), 1) % W
    mask_l = col >= 1                                        # valid when dx shift = -1
    mask_r = col <= W - 2                                    # valid when dx shift = +1

    # im2col over the 9 taps along the contraction (sublane) axis.
    taps = []
    for dy in range(3):
        for dx in range(3):
            s = (dy - 1) * W + (dx - 1)                      # flat lane shift
            xs = xf[:, P + s:P + s + HW]                     # (N*Cin, HW)
            if dx == 0:
                xs = jnp.where(mask_l, xs, 0.0)
            elif dx == 2:
                xs = jnp.where(mask_r, xs, 0.0)
            taps.append(xs)
    xcol = jnp.concatenate(taps, axis=0)                     # (9*N*Cin, HW)

    # Single MXU call with a lane-dense (H*W-wide) output, f32 accumulation.
    acc = jax.lax.dot_general(
        w_ref[...], xcol,
        dimension_numbers=(((1,), (0,)), ((), ())),
        preferred_element_type=jnp.float32)                  # (N*Cout, HW)

    # Conv bias + ReLU (bias broadcast along lanes from a column vector).
    y = jnp.maximum(acc + b_ref[...], 0.0)

    if not batch_norm:
        o_ref[...] = y
        return

    # ---- BatchNorm2d, train-mode batch statistics (biased variance), fused. ----
    # Per-channel stats over (N, H, W): lane-reduce each (n, cout) row, then fold
    # the N batch copies on tiny (Cout, 1) tensors.  Output is written once.
    # TODO(synk): running_mean / running_var buffer updates (training-time side
    # effect of nn.BatchNorm2d) are not modeled; only the forward normalization.
    inv_cnt = 1.0 / (N * HW)

    row_sum = jnp.sum(y, axis=1, keepdims=True)              # (N*Cout, 1)
    ch_sum = row_sum[0:Cout]
    for n in range(1, N):
        ch_sum = ch_sum + row_sum[n * Cout:(n + 1) * Cout]
    mean_rows = jnp.concatenate([ch_sum * inv_cnt] * N, axis=0)   # (N*Cout, 1)

    diff = y - mean_rows
    row_sq = jnp.sum(diff * diff, axis=1, keepdims=True)     # (N*Cout, 1)
    ch_sq = row_sq[0:Cout]
    for n in range(1, N):
        ch_sq = ch_sq + row_sq[n * Cout:(n + 1) * Cout]
    var_rows = jnp.concatenate([ch_sq * inv_cnt] * N, axis=0)     # (N*Cout, 1)

    scale = jax.lax.rsqrt(var_rows + eps) * gamma_ref[...]   # (N*Cout, 1)
    o_ref[...] = diff * scale + beta_ref[...]                # single lane-dense store


@functools.partial(jax.jit, static_argnames=("padding", "eps", "batch_norm"))
def mini_conv_block(x_nchw, w_oihw, b, gamma, beta, *, padding=1, eps=1e-5,
                    batch_norm=True):
    """NCHW in / NCHW out, matching PyTorch MiniConvBlock.forward (train mode)."""
    N, Cin, H, W = x_nchw.shape
    Cout, _, kh, kw = w_oihw.shape
    assert (kh, kw) == (3, 3), "kernel hard-codes the 3x3 conv of MiniConvBlock"
    assert padding == 1, "only the padding=True configuration is wired"
    # TODO(synk): padding=False (valid conv) would additionally need border masking
    # of the BN statistics; not implemented.

    HW = H * W
    f32 = jnp.float32

    # Free reshapes + tiny parameter prep (no transposes or spatial pads of x).
    x2d = x_nchw.astype(f32).reshape(N * Cin, HW)

    # w_all[n*Cout+o, k*N*Cin + m*Cin + c] = (n == m) * w[o, c, dy, dx], k = dy*3+dx
    w_tap = jnp.transpose(w_oihw.astype(f32), (2, 3, 0, 1)).reshape(9, Cout, Cin)
    eye = jnp.eye(N, dtype=f32)
    w_all = jnp.einsum("nm,koc->nokmc", eye, w_tap).reshape(N * Cout, 9 * N * Cin)

    b_rows = jnp.tile(b.astype(f32), N).reshape(N * Cout, 1)
    g_rows = jnp.tile(gamma.astype(f32), N).reshape(N * Cout, 1)
    beta_rows = jnp.tile(beta.astype(f32), N).reshape(N * Cout, 1)

    kernel = functools.partial(
        mini_conv_block_kernel,
        N=N, Cin=Cin, Cout=Cout, H=H, W=W, eps=eps, batch_norm=batch_norm)

    out2d = pl.pallas_call(
        kernel,
        out_shape=jax.ShapeDtypeStruct((N * Cout, HW), f32),
        in_specs=[pl.BlockSpec(memory_space=pltpu.MemorySpace.VMEM)] * 5,
        out_specs=pl.BlockSpec(memory_space=pltpu.MemorySpace.VMEM),
    )(x2d, w_all, b_rows, g_rows, beta_rows)

    # Free reshape back to the PyTorch NCHW output layout.
    return out2d.reshape(N, Cout, H, W)


def reference(x_nchw, w_oihw, b, gamma, beta, *, padding=1, eps=1e-5):
    """Pure-JAX reference replicating the PyTorch forward (train-mode BN)."""
    y = jax.lax.conv_general_dilated(
        x_nchw, w_oihw, window_strides=(1, 1),
        padding=[(padding, padding), (padding, padding)],
        dimension_numbers=("NCHW", "OIHW", "NCHW"))
    y = y + b.reshape(1, -1, 1, 1)
    y = jnp.maximum(y, 0.0)
    mean = jnp.mean(y, axis=(0, 2, 3), keepdims=True)
    var = jnp.mean((y - mean) ** 2, axis=(0, 2, 3), keepdims=True)
    y = (y - mean) * jax.lax.rsqrt(var + eps)
    return y * gamma.reshape(1, -1, 1, 1) + beta.reshape(1, -1, 1, 1)


if __name__ == "__main__":
    # MiniConvBlock(in_ch=4, out_ch=8, padding=True, batch_norm=True)
    N, Cin, H, W = 2, 4, 16, 16
    Cout = 8

    key = jax.random.PRNGKey(0)
    kx, kw, kb, kg, kbeta = jax.random.split(key, 5)

    x = jax.random.normal(kx, (N, Cin, H, W), jnp.float32)
    w = jax.random.normal(kw, (Cout, Cin, 3, 3), jnp.float32) * 0.1   # conv weight
    b = jax.random.normal(kb, (Cout,), jnp.float32) * 0.1             # conv bias
    gamma = 1.0 + 0.1 * jax.random.normal(kg, (Cout,), jnp.float32)   # BN weight
    beta = 0.1 * jax.random.normal(kbeta, (Cout,), jnp.float32)       # BN bias

    out = jax.block_until_ready(mini_conv_block(x, w, b, gamma, beta, padding=1))
    ref = jax.block_until_ready(reference(x, w, b, gamma, beta, padding=1))

    assert out.shape == (N, Cout, H, W), out.shape
    max_err = float(jnp.max(jnp.abs(out - ref)))
    assert jnp.allclose(out, ref, atol=2e-4, rtol=2e-4), max_err

    print("KERNEL_OK")
</pallas_src>

<mosaic_0001>
module attributes {stable_mosaic.version = 11 : i64} {
  func.func @mini_conv_block_kernel(%arg0: memref<8x256xf32, #tpu.memory_space<vmem>>, %arg1: memref<16x72xf32, #tpu.memory_space<vmem>>, %arg2: memref<16x1xf32, #tpu.memory_space<vmem>>, %arg3: memref<16x1xf32, #tpu.memory_space<vmem>>, %arg4: memref<16x1xf32, #tpu.memory_space<vmem>>, %arg5: memref<16x256xf32, #tpu.memory_space<vmem>>) attributes {dimension_semantics = [], scalar_prefetch = 0 : i64, scratch_operands = 0 : i64, tpu.core_type = #tpu.core_type<tc>} {
    %c0 = arith.constant 0 : index
    %c0_0 = arith.constant 0 : index
    %0 = vector.load %arg0[%c0, %c0_0] : memref<8x256xf32, #tpu.memory_space<vmem>>, vector<8x256xf32>
    %cst = arith.constant 0.000000e+00 : f32
    %1 = vector.broadcast %cst : f32 to vector<8x17xf32>
    %2 = tpu.concatenate %1, %0, %1 in 1 : vector<8x17xf32>, vector<8x256xf32>, vector<8x17xf32> -> vector<8x290xf32>
    %3 = tpu.iota {dimensions = array<i32: 1>} : vector<8x256xi32>
    %c16_i32 = arith.constant 16 : i32
    %c0_i32 = arith.constant 0 : i32
    %4 = arith.cmpi eq, %c16_i32, %c0_i32 : i32
    %c1_i32 = arith.constant 1 : i32
    %5 = arith.select %4, %c1_i32, %c16_i32 : i32
    %6 = vector.broadcast %5 : i32 to vector<8x256xi32>
    %7 = arith.remsi %3, %6 : vector<8x256xi32>
    %c0_i32_1 = arith.constant 0 : i32
    %8 = vector.broadcast %c0_i32_1 : i32 to vector<8x256xi32>
    %9 = arith.cmpi ne, %7, %8 : vector<8x256xi32>
    %c0_i32_2 = arith.constant 0 : i32
    %10 = vector.broadcast %c0_i32_2 : i32 to vector<8x256xi32>
    %11 = arith.cmpi slt, %7, %10 : vector<8x256xi32>
    %c0_i32_3 = arith.constant 0 : i32
    %12 = arith.cmpi slt, %5, %c0_i32_3 : i32
    %13 = vector.broadcast %12 : i1 to vector<8x256xi1>
    %14 = vector.broadcast %13 : vector<8x256xi1> to vector<8x256xi1>
    %15 = arith.xori %11, %14 : vector<8x256xi1>
    %16 = arith.andi %15, %9 : vector<8x256xi1>
    %17 = vector.broadcast %5 : i32 to vector<8x256xi32>
    %18 = arith.addi %7, %17 : vector<8x256xi32>
    %19 = arith.select %16, %18, %7 : vector<8x256xi1>, vector<8x256xi32>
    %c1_i32_4 = arith.constant 1 : i32
    %20 = vector.broadcast %c1_i32_4 : i32 to vector<8x256xi32>
    %21 = arith.cmpi sge, %19, %20 : vector<8x256xi32>
    %c14_i32 = arith.constant 14 : i32
    %22 = vector.broadcast %c14_i32 : i32 to vector<8x256xi32>
    %23 = arith.cmpi sle, %19, %22 : vector<8x256xi32>
    %24 = vector.extract_strided_slice %2 {offsets = [0, 0], sizes = [8, 256], strides = [1, 1]} : vector<8x290xf32> to vector<8x256xf32>
    %cst_5 = arith.constant 0.000000e+00 : f32
    %25 = vector.broadcast %cst_5 : f32 to vector<8x256xf32>
    %26 = arith.select %21, %24, %25 : vector<8x256xi1>, vector<8x256xf32>
    %27 = vector.extract_strided_slice %2 {offsets = [0, 1], sizes = [8, 256], strides = [1, 1]} : vector<8x290xf32> to vector<8x256xf32>
    %28 = vector.extract_strided_slice %2 {offsets = [0, 2], sizes = [8, 256], strides = [1, 1]} : vector<8x290xf32> to vector<8x256xf32>
    %cst_6 = arith.constant 0.000000e+00 : f32
    %29 = vector.broadcast %cst_6 : f32 to vector<8x256xf32>
    %30 = arith.select %23, %28, %29 : vector<8x256xi1>, vector<8x256xf32>
    %31 = vector.extract_strided_slice %2 {offsets = [0, 16], sizes = [8, 256], strides = [1, 1]} : vector<8x290xf32> to vector<8x256xf32>
    %cst_7 = arith.constant 0.000000e+00 : f32
    %32 = vector.broadcast %cst_7 : f32 to vector<8x256xf32>
    %33 = arith.select %21, %31, %32 : vector<8x256xi1>, vector<8x256xf32>
    %34 = vector.extract_strided_slice %2 {offsets = [0, 17], sizes = [8, 256], strides = [1, 1]} : vector<8x290xf32> to vector<8x256xf32>
    %35 = vector.extract_strided_slice %2 {offsets = [0, 18], sizes = [8, 256], strides = [1, 1]} : vector<8x290xf32> to vector<8x256xf32>
    %cst_8 = arith.constant 0.000000e+00 : f32
    %36 = vector.broadcast %cst_8 : f32 to vector<8x256xf32>
    %37 = arith.select %23, %35, %36 : vector<8x256xi1>, vector<8x256xf32>
    %38 = vector.extract_strided_slice %2 {offsets = [0, 32], sizes = [8, 256], strides = [1, 1]} : vector<8x290xf32> to vector<8x256xf32>
    %cst_9 = arith.constant 0.000000e+00 : f32
    %39 = vector.broadcast %cst_9 : f32 to vector<8x256xf32>
    %40 = arith.select %21, %38, %39 : vector<8x256xi1>, vector<8x256xf32>
    %41 = vector.extract_strided_slice %2 {offsets = [0, 33], sizes = [8, 256], strides = [1, 1]} : vector<8x290xf32> to vector<8x256xf32>
    %42 = vector.extract_strided_slice %2 {offsets = [0, 34], sizes = [8, 256], strides = [1, 1]} : vector<8x290xf32> to vector<8x256xf32>
    %cst_10 = arith.constant 0.000000e+00 : f32
    %43 = vector.broadcast %cst_10 : f32 to vector<8x256xf32>
    %44 = arith.select %23, %42, %43 : vector<8x256xi1>, vector<8x256xf32>
    %45 = tpu.concatenate %26, %27, %30, %33, %34, %37, %40, %41, %44 in 0 : vector<8x256xf32>, vector<8x256xf32>, vector<8x256xf32>, vector<8x256xf32>, vector<8x256xf32>, vector<8x256xf32>, vector<8x256xf32>, vector<8x256xf32>, vector<8x256xf32> -> vector<72x256xf32>
    %c0_11 = arith.constant 0 : index
    %c0_12 = arith.constant 0 : index
    %46 = vector.load %arg1[%c0_11, %c0_12] : memref<16x72xf32, #tpu.memory_space<vmem>>, vector<16x72xf32>
    %cst_13 = arith.constant dense<0.000000e+00> : vector<16x256xf32>
    %47 = tpu.matmul %46, %45, %cst_13 {dimension_numbers = #tpu.dot_dimension_numbers<[1], [0], [0], [1], [0, 0, 1, 1], [], []>} : vector<16x72xf32>, vector<72x256xf32>, vector<16x256xf32> -> vector<16x256xf32>
    %c0_14 = arith.constant 0 : index
    %c0_15 = arith.constant 0 : index
    %48 = vector.load %arg2[%c0_14, %c0_15] : memref<16x1xf32, #tpu.memory_space<vmem>>, vector<16x1xf32>
    %49 = vector.broadcast %48 : vector<16x1xf32> to vector<16x256xf32>
    %50 = arith.addf %47, %49 : vector<16x256xf32>
    %cst_16 = arith.constant 0.000000e+00 : f32
    %51 = vector.broadcast %cst_16 : f32 to vector<16x256xf32>
    %52 = arith.maximumf %50, %51 : vector<16x256xf32>
    %cst_17 = arith.constant dense<0.000000e+00> : vector<16xf32>
    %53 = vector.multi_reduction <add>, %52, %cst_17 [1] : vector<16x256xf32> to vector<16xf32>
    %54 = vector.shape_cast %53 : vector<16xf32> to vector<16x1xf32>
    %55 = vector.extract_strided_slice %54 {offsets = [0, 0], sizes = [8, 1], strides = [1, 1]} : vector<16x1xf32> to vector<8x1xf32>
    %56 = vector.extract_strided_slice %54 {offsets = [8, 0], sizes = [8, 1], strides = [1, 1]} : vector<16x1xf32> to vector<8x1xf32>
    %57 = arith.addf %55, %56 : vector<8x1xf32>
    %cst_18 = arith.constant 0.001953125 : f32
    %58 = vector.broadcast %cst_18 : f32 to vector<8x1xf32>
    %59 = arith.mulf %57, %58 : vector<8x1xf32>
    %60 = tpu.concatenate %59, %59 in 0 : vector<8x1xf32>, vector<8x1xf32> -> vector<16x1xf32>
    %61 = vector.broadcast %60 : vector<16x1xf32> to vector<16x256xf32>
    %62 = arith.subf %52, %61 : vector<16x256xf32>
    %63 = arith.mulf %62, %62 : vector<16x256xf32>
    %cst_19 = arith.constant dense<0.000000e+00> : vector<16xf32>
    %64 = vector.multi_reduction <add>, %63, %cst_19 [1] : vector<16x256xf32> to vector<16xf32>
    %65 = vector.shape_cast %64 : vector<16xf32> to vector<16x1xf32>
    %66 = vector.extract_strided_slice %65 {offsets = [0, 0], sizes = [8, 1], strides = [1, 1]} : vector<16x1xf32> to vector<8x1xf32>
    %67 = vector.extract_strided_slice %65 {offsets = [8, 0], sizes = [8, 1], strides = [1, 1]} : vector<16x1xf32> to vector<8x1xf32>
    %68 = arith.addf %66, %67 : vector<8x1xf32>
    %cst_20 = arith.constant 0.001953125 : f32
    %69 = vector.broadcast %cst_20 : f32 to vector<8x1xf32>
    %70 = arith.mulf %68, %69 : vector<8x1xf32>
    %71 = tpu.concatenate %70, %70 in 0 : vector<8x1xf32>, vector<8x1xf32> -> vector<16x1xf32>
    %cst_21 = arith.constant 9.99999974E-6 : f32
    %72 = vector.broadcast %cst_21 : f32 to vector<16x1xf32>
    %73 = arith.addf %71, %72 : vector<16x1xf32>
    %74 = math.rsqrt %73 : vector<16x1xf32>
    %c0_22 = arith.constant 0 : index
    %c0_23 = arith.constant 0 : index
    %75 = vector.load %arg3[%c0_22, %c0_23] : memref<16x1xf32, #tpu.memory_space<vmem>>, vector<16x1xf32>
    %76 = arith.mulf %74, %75 : vector<16x1xf32>
    %77 = vector.broadcast %76 : vector<16x1xf32> to vector<16x256xf32>
    %78 = arith.mulf %62, %77 : vector<16x256xf32>
    %c0_24 = arith.constant 0 : index
    %c0_25 = arith.constant 0 : index
    %79 = vector.load %arg4[%c0_24, %c0_25] : memref<16x1xf32, #tpu.memory_space<vmem>>, vector<16x1xf32>
    %80 = vector.broadcast %79 : vector<16x1xf32> to vector<16x256xf32>
    %81 = arith.addf %78, %80 : vector<16x256xf32>
    %c0_26 = arith.constant 0 : index
    %c0_27 = arith.constant 0 : index
    %82 = vector.load %arg5[%c0_26, %c0_27] : memref<16x256xf32, #tpu.memory_space<vmem>>, vector<16x256xf32>
    tpu.vector_store %arg5[%c0_26, %c0_27], %81 {strides = array<i32>} : memref<16x256xf32, #tpu.memory_space<vmem>>, vector<16x256xf32>,
    return
  }
}

</mosaic_0001>

<llo_original>
// kernel: tile.18
$region0: #{tile.18}
  #allocation0 [shape = 's32[1]{0}', space=sflag, size = 0x4, scoped, tag = 'scoped memory for tile.18']
  %s0 = inlined_call_operand.vmem [shape: f32[8], index: 0, kind: input, shape index: {}]
  %s1 = inlined_call_operand.vmem [shape: f32[2,8], index: 1, kind: output, shape index: {}]
  // Predicated region
  $region2: #{tile.18} parent=0 // pred_check
    _
  $region3: #{tile.18} parent=0 // pred_check_branch
    %3 = sbr.rel (0) target = $region5
  $region4: #{tile.18} parent=0 // pred_region
    _
  $region5: #{tile.18} parent=0 // pred_fallthru
    _
  %v4 = vld [vmem:[%s0] ss:$0 sm:$0xff]
  %5 = vst [vmem:[%s1] sm:$0x3] %v4

// kernel: tile.2
$region0: #{tile.2}
  %s0 = inlined_call_operand.vmem [shape: f32[2,8], index: 0, kind: input, shape index: {}]
  %s1 = inlined_call_operand.vmem [shape: f32[16,1], index: 1, kind: output, shape index: {}]
  $region1: #{tile.2} parent=0
    #allocation0 [shape = 'u8[4096]{0}', space=vmem, size = 0x1000, scoped, tag = 'scoped mem for input reshape']
    %s3 = ssub.s32 4, 1
    %v4 = vld [vmem:[%s0] sm:%s3]
    %5 = vst [vmem:[#allocation0] sm:%s3] %v4
    %v6 = vld [vmem:[#allocation0] sm:$0x3]
    %vm7 = vcmask 7168
    %8 = vst.msk [vmem:[%s1] ss:$8 sm:$0x3] %vm7, %v6
    %v9 = vld [vmem:[#allocation0] sm:$0x3]
    %10 = vrot.lane.b32.xlu0 %v9, 127
    %v11 = vpop.permute.xlu0 %10
    %vm12 = vcmask 7168
    %s13 = scalar_lea.vmem %s1, 1
    %14 = vst.msk [vmem:[%s13] ss:$8 sm:$0x3] %vm12, %v11
    %v15 = vld [vmem:[#allocation0] sm:$0x3]
    %16 = vrot.lane.b32.xlu0 %v15, 126
    %v17 = vpop.permute.xlu0 %16
    %vm18 = vcmask 7168
    %s19 = scalar_lea.vmem %s1, 2
    %20 = vst.msk [vmem:[%s19] ss:$8 sm:$0x3] %vm18, %v17
    %v21 = vld [vmem:[#allocation0] sm:$0x3]
    %22 = vrot.lane.b32.xlu0 %v21, 125
    %v23 = vpop.permute.xlu0 %22
    %vm24 = vcmask 7168
    %s25 = scalar_lea.vmem %s1, 3
    %26 = vst.msk [vmem:[%s25] ss:$8 sm:$0x3] %vm24, %v23
    %v27 = vld [vmem:[#allocation0] sm:$0x3]
    %28 = vrot.lane.b32.xlu0 %v27, 124
    %v29 = vpop.permute.xlu0 %28
    %vm30 = vcmask 7168
    %s31 = scalar_lea.vmem %s1, 4
    %32 = vst.msk [vmem:[%s31] ss:$8 sm:$0x3] %vm30, %v29
    %v33 = vld [vmem:[#allocation0] sm:$0x3]
    %34 = vrot.lane.b32.xlu0 %v33, 123
    %v35 = vpop.permute.xlu0 %34
    %vm36 = vcmask 7168
    %s37 = scalar_lea.vmem %s1, 5
    %38 = vst.msk [vmem:[%s37] ss:$8 sm:$0x3] %vm36, %v35
    %v39 = vld [vmem:[#allocation0] sm:$0x3]
    %40 = vrot.lane.b32.xlu0 %v39, 122
    %v41 = vpop.permute.xlu0 %40
    %vm42 = vcmask 7168
    %s43 = scalar_lea.vmem %s1, 6
    %44 = vst.msk [vmem:[%s43] ss:$8 sm:$0x3] %vm42, %v41
    %v45 = vld [vmem:[#allocation0] sm:$0x3]
    %46 = vrot.lane.b32.xlu0 %v45, 121
    %v47 = vpop.permute.xlu0 %46
    %vm48 = vcmask 7168
    %s49 = scalar_lea.vmem %s1, 7
    %50 = vst.msk [vmem:[%s49] ss:$8 sm:$0x3] %vm48, %v47

// kernel: mini_conv_block.1
$region0: #{mini_conv_block.1}
  #allocation0 [shape = 'u32[]', space=smem, size = 0x4, offset = 0x4, fixed_abs, tag = 'smem constant byte address 0x4 - core index']
  #allocation1 [shape = 'u32[72,128]{1,0:T(1,128)}', space=vmem, size = 0x9000, scoped, tag = 'internal scratch']
  %s0 = inlined_call_operand.vmem [shape: f32[8,256], index: 0, kind: input, shape index: {}]
  %s1 = inlined_call_operand.vmem [shape: f32[16,72], index: 1, kind: input, shape index: {}]
  %s2 = inlined_call_operand.vmem [shape: f32[16,1], index: 2, kind: input, shape index: {}]
  %s3 = inlined_call_operand.vmem [shape: f32[16,1], index: 3, kind: input, shape index: {}]
  %s4 = inlined_call_operand.vmem [shape: f32[16,1], index: 4, kind: input, shape index: {}]
  %s5 = inlined_call_operand.vmem [shape: f32[16,256], index: 5, kind: output, shape index: {}]
  %s6 = sld [smem:[#allocation0]]
  $region30: #{mini_conv_block.1} parent=0
    _
  %s8 = ssub.s32 1, %s6
  %s9 = scalar_select 0, %s8, %s6
  // Predicated region
  $region2: #{mini_conv_block.1} parent=0 // pred_check
    _
  $region3: #{mini_conv_block.1} parent=0 // pred_check_branch
    %11 = sbr.rel (0) target = $region5
  $region4: #{mini_conv_block.1} parent=0 // pred_region
    _
  $region5: #{mini_conv_block.1} parent=0 // pred_fallthru
    _
  // Predicated region
  $region6: #{mini_conv_block.1} parent=0 // pred_check
    _
  $region7: #{mini_conv_block.1} parent=0 // pred_check_branch
    %13 = sbr.rel (0) target = $region9
  $region8: #{mini_conv_block.1} parent=0 // pred_region
    _
  $region9: #{mini_conv_block.1} parent=0 // pred_fallthru
    _
  // Predicated region
  $region10: #{mini_conv_block.1} parent=0 // pred_check
    _
  $region11: #{mini_conv_block.1} parent=0 // pred_check_branch
    %15 = sbr.rel (0) target = $region13
  $region12: #{mini_conv_block.1} parent=0 // pred_region
    _
  $region13: #{mini_conv_block.1} parent=0 // pred_fallthru
    _
  // Predicated region
  $region14: #{mini_conv_block.1} parent=0 // pred_check
    _
  $region15: #{mini_conv_block.1} parent=0 // pred_check_branch
    %17 = sbr.rel (0) target = $region17
  $region16: #{mini_conv_block.1} parent=0 // pred_region
    _
  $region17: #{mini_conv_block.1} parent=0 // pred_fallthru
    _
  // Predicated region
  $region18: #{mini_conv_block.1} parent=0 // pred_check
    _
  $region19: #{mini_conv_block.1} parent=0 // pred_check_branch
    %19 = sbr.rel (0) target = $region21
  $region20: #{mini_conv_block.1} parent=0 // pred_region
    _
  $region21: #{mini_conv_block.1} parent=0 // pred_fallthru
    _
  %v20 = vld [vmem:[%s0] sm:$0xff]
  %v21 = vld [vmem:[%s0 + $0x8] sm:$0xff]
  %24 = vrot.lane.b32.xlu0 %v20, 17
  %v25 = vpop.permute.xlu0 %24
  %26 = vrot.lane.b32.xlu0 %v21, 17
  %v27 = vpop.permute.xlu0 %26
  %vm28 = vcmask 138240
  %v29 = vsel %vm28, %v25, %v27
  %v33 = vsel %vm28, 0.0, %v25
  %v34 = vsel %vm28, %v27, 0.0
  %v35 = vlaneseq
  %v36 = vand.u32 %v35, 127
  %v37 = vadd.s32 %v36, 128
  %vm38 = vcmp.lt.s32.totalorder %v36, 0
  %v39 = vsub.s32 0, %v36
  %v40 = vsel %vm38, %v39, %v36
  %v41 = vshrl.u32 %v40, 4
  %v42 = vand.u32 %v40, 15
  %v43 = vsub.s32 0, %v42
  %v44 = vsel %vm38, %v43, %v42
  %vm45 = vcmp.lt.s32.totalorder %v37, 0
  %v46 = vsub.s32 0, %v37
  %v47 = vsel %vm45, %v46, %v37
  %v48 = vshrl.u32 %v47, 4
  %v49 = vand.u32 %v47, 15
  %v50 = vsub.s32 0, %v49
  %v51 = vsel %vm45, %v50, %v49
  %vm52 = vcmp.ne.s32.totalorder %v44, 0
  %vm53 = vcmp.ne.s32.totalorder %v51, 0
  %vm54 = vcmp.lt.s32.totalorder %v44, 0
  %vm55 = vcmp.lt.s32.totalorder %v51, 0
  %vm56 = vmand %vm54, %vm52
  %vm57 = vmand %vm55, %vm53
  %v58 = vadd.s32 %v44, 16
  %v59 = vadd.s32 %v51, 16
  %v60 = vsel %vm56, %v58, %v44
  %v61 = vsel %vm57, %v59, %v51
  %vm62 = vcmp.ge.s32.totalorder %v60, 1
  %vm63 = vcmp.ge.s32.totalorder %v61, 1
  %vm64 = vcmp.le.s32.totalorder %v60, 14
  %vm65 = vcmp.le.s32.totalorder %v61, 14
  %v66 = vsel %vm62, %v33, 0.0
  %v67 = vsel %vm63, %v29, 0.0
  %70 = vrot.lane.b32.xlu0 %v33, 126
  %v71 = vpop.permute.xlu0 %70
  %72 = vrot.lane.b32.xlu0 %v29, 126
  %v73 = vpop.permute.xlu0 %72
  %74 = vrot.lane.b32.xlu0 %v34, 126
  %v75 = vpop.permute.xlu0 %74
  %vm76 = vcmask 1031168
  %v77 = vsel %vm76, %v71, %v73
  %v78 = vsel %vm76, %v73, %v75
  %v81 = vsel %vm64, %v77, 0.0
  %v82 = vsel %vm65, %v78, 0.0
  %83 = vrot.lane.b32.xlu0 %v33, 112
  %v84 = vpop.permute.xlu0 %83
  %85 = vrot.lane.b32.xlu0 %v29, 112
  %v86 = vpop.permute.xlu0 %85
  %87 = vrot.lane.b32.xlu0 %v34, 112
  %v88 = vpop.permute.xlu0 %87
  %vm89 = vcmask 916480
  %v90 = vsel %vm89, %v84, %v86
  %v91 = vsel %vm89, %v86, %v88
  %v94 = vsel %vm62, %v90, 0.0
  %v95 = vsel %vm63, %v91, 0.0
  %96 = vrot.lane.b32.xlu0 %v33, 110
  %v97 = vpop.permute.xlu0 %96
  %98 = vrot.lane.b32.xlu0 %v29, 110
  %v99 = vpop.permute.xlu0 %98
  %100 = vrot.lane.b32.xlu0 %v34, 110
  %v101 = vpop.permute.xlu0 %100
  %vm102 = vcmask 900096
  %v103 = vsel %vm102, %v97, %v99
  %v104 = vsel %vm102, %v99, %v101
  %v107 = vsel %vm64, %v103, 0.0
  %v108 = vsel %vm65, %v104, 0.0
  %109 = vrot.lane.b32.xlu0 %v33, 96
  %v110 = vpop.permute.xlu0 %109
  %111 = vrot.lane.b32.xlu0 %v29, 96
  %v112 = vpop.permute.xlu0 %111
  %113 = vrot.lane.b32.xlu0 %v34, 96
  %v114 = vpop.permute.xlu0 %113
  %vm115 = vcmask 785408
  %v116 = vsel %vm115, %v110, %v112
  %v117 = vsel %vm115, %v112, %v114
  %v120 = vsel %vm62, %v116, 0.0
  %v121 = vsel %vm63, %v117, 0.0
  %122 = vrot.lane.b32.xlu0 %v33, 94
  %v123 = vpop.permute.xlu0 %122
  %124 = vrot.lane.b32.xlu0 %v29, 94
  %v125 = vpop.permute.xlu0 %124
  %126 = vrot.lane.b32.xlu0 %v34, 94
  %v127 = vpop.permute.xlu0 %126
  %vm128 = vcmask 769024
  %v129 = vsel %vm128, %v123, %v125
  %v130 = vsel %vm128, %v125, %v127
  %v133 = vsel %vm64, %v129, 0.0
  %v134 = vsel %vm65, %v130, 0.0
  %135 = vrot.lane.b32.xlu0 %v33, 127
  %v136 = vpop.permute.xlu0 %135
  %137 = vrot.lane.b32.xlu0 %v29, 127
  %v138 = vpop.permute.xlu0 %137
  %139 = vrot.lane.b32.xlu0 %v34, 127
  %v140 = vpop.permute.xlu0 %139
  %vm141 = vcmask 1039360
  %v142 = vsel %vm141, %v136, %v138
  %v143 = vsel %vm141, %v138, %v140
  %146 = vrot.lane.b32.xlu0 %v33, 111
  %v147 = vpop.permute.xlu0 %146
  %148 = vrot.lane.b32.xlu0 %v29, 111
  %v149 = vpop.permute.xlu0 %148
  %150 = vrot.lane.b32.xlu0 %v34, 111
  %v151 = vpop.permute.xlu0 %150
  %vm152 = vcmask 908288
  %v153 = vsel %vm152, %v147, %v149
  %v154 = vsel %vm152, %v149, %v151
  %157 = vrot.lane.b32.xlu0 %v33, 95
  %v158 = vpop.permute.xlu0 %157
  %159 = vrot.lane.b32.xlu0 %v29, 95
  %v160 = vpop.permute.xlu0 %159
  %161 = vrot.lane.b32.xlu0 %v34, 95
  %v162 = vpop.permute.xlu0 %161
  %vm163 = vcmask 777216
  %v164 = vsel %vm163, %v158, %v160
  %v165 = vsel %vm163, %v160, %v162
  %v168 = vld [vmem:[%s1] sm:$0xff]
  %v169 = vld [vmem:[%s1 + $0x8] sm:$0xff]
  %v170 = vld [vmem:[%s2] sm:$0xff]
  %v171 = vld [vmem:[%s2 + $0x8] sm:$0xff]
  %173 = vset.pattern.permute.xlu0 0
  %174 = vperm.xlu0 %173, %v170
  %v175 = vpop.permute.xlu0 %174
  %178 = vset.pattern.permute.xlu0 0
  %179 = vperm.xlu0 %178, %v171
  %v180 = vpop.permute.xlu0 %179
  %vm182 = vcmask 588800
  %v184 = vsel %vm182, %v168, 0
  %v187 = vsel %vm182, %v169, 0
  %189 = vmatpush.msra.mxu0 0.0
  %190 = vmatpush.msra.mxu0 0.0
  %191 = vmatpush.msra.mxu0 0.0
  %192 = vmatpush.msra.mxu0 0.0
  %193 = vmatpush.msra.mxu0 0.0
  %194 = vmatpush.msra.mxu0 0.0
  %195 = vmatpush.msra.mxu0 0.0
  %196 = vmatpush.msra.mxu0 %v133
  %197 = vmatpush.msra.mxu0 %v164
  %198 = vmatpush.msra.mxu0 %v120
  %199 = vmatpush.msra.mxu0 %v107
  %200 = vmatpush.msra.mxu0 %v153
  %201 = vmatpush.msra.mxu0 %v94
  %202 = vmatpush.msra.mxu0 %v81
  %203 = vmatpush.msra.mxu0 %v142
  %204 = vmatpush.msra.mxu0 %v66
  %205 = vmatmul.f32.gmra.mxu0 %v184
  %v206 = vpop.f32.mrf.mxu0
  %v207 = vadd.f32 %v175, %v206
  %208 = vmatmul.f32.gmra.mxu0 %v187
  %v209 = vpop.f32.mrf.mxu0
  %v210 = vadd.f32 %v180, %v209
  %211 = vdwg.mxu0
  %212 = vmatpush.msra.mxu0 0.0
  %213 = vmatpush.msra.mxu0 0.0
  %214 = vmatpush.msra.mxu0 0.0
  %215 = vmatpush.msra.mxu0 0.0
  %216 = vmatpush.msra.mxu0 0.0
  %217 = vmatpush.msra.mxu0 0.0
  %218 = vmatpush.msra.mxu0 0.0
  %219 = vmatpush.msra.mxu0 %v134
  %220 = vmatpush.msra.mxu0 %v165
  %221 = vmatpush.msra.mxu0 %v121
  %222 = vmatpush.msra.mxu0 %v108
  %223 = vmatpush.msra.mxu0 %v154
  %224 = vmatpush.msra.mxu0 %v95
  %225 = vmatpush.msra.mxu0 %v82
  %226 = vmatpush.msra.mxu0 %v143
  %227 = vmatpush.msra.mxu0 %v67
  %228 = vmatmul.f32.gmra.mxu0 %v184
  %v229 = vpop.f32.mrf.mxu0
  %v230 = vadd.f32 %v175, %v229
  %231 = vmatmul.f32.gmra.mxu0 %v187
  %v232 = vpop.f32.mrf.mxu0
  %v233 = vadd.f32 %v180, %v232
  %234 = vdwg.mxu0
  %v235 = vmax.f32 %v207, 0.0
  %v236 = vmax.f32 %v230, 0.0
  %v237 = vmax.f32 %v210, 0.0
  %v238 = vmax.f32 %v233, 0.0
  %v239 = vadd.f32 %v235, %v236
  %240 = vadd.xlane.f32.xlu0 %v239
  %v241 = vpop.xlane.xlu0 %240
  %v242 = vadd.f32 %v237, %v238
  %243 = vadd.xlane.f32.xlu0 %v242
  %v244 = vpop.xlane.xlu0 %243
  %v245 = vadd.f32 %v241, %v244
  %v246 = vmul.f32 %v245, 0.001953125
  %248 = vset.pattern.permute.xlu0 0
  %249 = vperm.xlu0 %248, %v246
  %v250 = vpop.permute.xlu0 %249
  %v252 = vsub.f32 %v235, %v250
  %v253 = vsub.f32 %v236, %v250
  %v254 = vsub.f32 %v237, %v250
  %v255 = vsub.f32 %v238, %v250
  %v256 = vmul.f32 %v252, %v252
  %v257 = vmul.f32 %v253, %v253
  %v258 = vmul.f32 %v254, %v254
  %v259 = vmul.f32 %v255, %v255
  %v260 = vadd.f32 %v256, %v257
  %261 = vadd.xlane.f32.xlu0 %v260
  %v262 = vpop.xlane.xlu0 %261
  %v263 = vadd.f32 %v258, %v259
  %264 = vadd.xlane.f32.xlu0 %v263
  %v265 = vpop.xlane.xlu0 %264
  %v266 = vadd.f32 %v262, %v265
  %v267 = vmul.f32 %v266, 0.001953125
  %v268 = vadd.f32 %v267, 1e-05
  %v269 = vrsqrt.pop %v268
  %v270 = vmul.f32 %v269, %v268
  %v271 = vmul.f32 %v270, %v269
  %v272 = vmul.f32 0.5, %v271
  %v273 = vsub.f32 1.5, %v272
  %v274 = vmul.f32 %v269, %v273
  %vm275 = vweird.f32 %v268
  %vm276 = vweird.f32 %v269
  %vm277 = vmor %vm275, %vm276
  %v278 = vsel %vm277, %v269, %v274
  %v279 = vld [vmem:[%s3] sm:$0xff]
  %v280 = vld [vmem:[%s3 + $0x8] sm:$0xff]
  %v281 = vmul.f32 %v278, %v279
  %v282 = vmul.f32 %v278, %v280
  %284 = vset.pattern.permute.xlu0 0
  %285 = vperm.xlu0 %284, %v281
  %v286 = vpop.permute.xlu0 %285
  %289 = vset.pattern.permute.xlu0 0
  %290 = vperm.xlu0 %289, %v282
  %v291 = vpop.permute.xlu0 %290
  %v293 = vmul.f32 %v252, %v286
  %v294 = vmul.f32 %v253, %v286
  %v295 = vmul.f32 %v254, %v291
  %v296 = vmul.f32 %v255, %v291
  %v297 = vld [vmem:[%s4] sm:$0xff]
  %v298 = vld [vmem:[%s4 + $0x8] sm:$0xff]
  %300 = vset.pattern.permute.xlu0 0
  %301 = vperm.xlu0 %300, %v297
  %v302 = vpop.permute.xlu0 %301
  %305 = vset.pattern.permute.xlu0 0
  %306 = vperm.xlu0 %305, %v298
  %v307 = vpop.permute.xlu0 %306
  %v309 = vadd.f32 %v293, %v302
  %v310 = vadd.f32 %v294, %v302
  %v311 = vadd.f32 %v295, %v307
  %v312 = vadd.f32 %v296, %v307
  %313 = vst [vmem:[%s5] sm:$0xff] %v309
  %314 = vst [vmem:[%s5 + $0x8] sm:$0xff] %v310
  %315 = vst [vmem:[%s5 + $0x10] sm:$0xff] %v311
  %316 = vst [vmem:[%s5 + $0x18] sm:$0xff] %v312
  // Predicated region
  $region22: #{mini_conv_block.1} parent=0 // pred_check
    _
  $region23: #{mini_conv_block.1} parent=0 // pred_check_branch
    %318 = sbr.rel (0) target = $region25
  $region24: #{mini_conv_block.1} parent=0 // pred_region
    _
  $region25: #{mini_conv_block.1} parent=0 // pred_fallthru
    _
  // Predicated region
  $region26: #{mini_conv_block.1} parent=0 // pred_check
    _
  $region27: #{mini_conv_block.1} parent=0 // pred_check_branch
    %320 = sbr.rel (0) target = $region29
  $region28: #{mini_conv_block.1} parent=0 // pred_region
    _
  $region29: #{mini_conv_block.1} parent=0 // pred_fallthru
    _

</llo_original>
